<compile_context>
chip_gen: v6e
topology: v6e:2x2x1
jax: 0.10.0
libtpu: 0.0.40
codegen_flags: <defaults>
</compile_context>

<pallas_src>
import functools

import jax
import jax.numpy as jnp
import numpy as np
from jax import lax
from jax.experimental import pallas as pl
from jax.experimental.pallas import tpu as pltpu


def _multipos_con_loss_kernel(fq_ref, fkt_ref, labq_ref, labk_ref, out_ref,
                              l_ref, s_ref, c_ref, *,
                              inv_temp, n_real, n_pad, tq, tk):
    qi = pl.program_id(0)
    ki = pl.program_id(1)
    nk = pl.num_programs(1)

    # ---- init per row-tile (runs once per qi, at the first K step) --------
    @pl.when(ki == 0)
    def _():
        l_ref[...] = jnp.zeros_like(l_ref)
        s_ref[...] = jnp.zeros_like(s_ref)
        c_ref[...] = jnp.zeros_like(c_ref)

    # ---- logits tile: (TQ, D) @ (D, TK) on the MXU, f32 accumulation ------
    # fq is already L2-normalized and pre-scaled by 1/temperature; fkt is the
    # L2-normalized feature matrix stored transposed, so no NT transpose.
    logits = jnp.dot(fq_ref[...], fkt_ref[...],
                     preferred_element_type=jnp.float32)          # (TQ, TK)

    # ---- fused masks (never materialized as separate N x N arrays) --------
    row = qi * tq + lax.broadcasted_iota(jnp.int32, (tq, tk), 0)
    col = ki * tk + lax.broadcasted_iota(jnp.int32, (tq, tk), 1)
    is_self = row == col
    same_label = labq_ref[...] == labk_ref[...]                   # (TQ, TK)

    if n_pad > n_real:
        # Padded rows/cols exist: exclude padded columns from the softmax and
        # padded rows/cols from the positive mask (trace-time gated).
        col_valid = col < n_real
        row_valid = row < n_real
        drop = jnp.logical_or(is_self, jnp.logical_not(col_valid))
        pos = same_label & jnp.logical_not(is_self) & col_valid & row_valid
    else:
        drop = is_self
        pos = same_label & jnp.logical_not(is_self)

    # self / padded columns get -1e9 (exp underflows to 0), matching
    # the PyTorch "logits - (1 - logits_mask) * 1e9".
    logits = jnp.where(drop, -1e9, logits)

    # ---- streaming sum-exp with a STATIC max (|logits| <= inv_temp) -------
    l_ref[...] += jnp.sum(jnp.exp(logits - inv_temp), axis=-1, keepdims=True)

    # ---- masked-logit sum and positive counts ------------------------------
    s_ref[...] += jnp.sum(jnp.where(pos, logits, 0.0), axis=-1, keepdims=True)
    c_ref[...] += jnp.sum(pos.astype(jnp.float32), axis=-1, keepdims=True)

    # ---- finalize: per-row loss -> partial sum for this row-tile -----------
    @pl.when(ki == nk - 1)
    def _():
        lse = inv_temp + jnp.log(l_ref[...])                      # (TQ, 1)
        c = c_ref[...]
        # sum_j p_ij * logq_ij == (s_i - c_i * lse_i) / c_i ; rows with no
        # positives (c_i == 0, incl. padded rows) contribute exactly 0.
        per_row = jnp.where(c > 0.0, (s_ref[...] - c * lse) / jnp.maximum(c, 1.0),
                            0.0)
        partial = jnp.sum(per_row)                                # scalar
        r8 = lax.broadcasted_iota(jnp.int32, (8, 128), 0)
        c8 = lax.broadcasted_iota(jnp.int32, (8, 128), 1)
        out_ref[...] = jnp.where((r8 == 0) & (c8 == 0), partial, 0.0)


def multipos_con_loss(feats, labels, temperature=0.1,
                      mxu_dtype=jnp.bfloat16, tq=None, tk=None):
    """feats: (N, D) float, labels: (N,) int. Returns scalar f32 loss."""
    n, d = feats.shape

    # ---- tile selection ----------------------------------------------------
    # Rectangular tiles: big row tile (more reuse of the streamed K tile),
    # TK=256 keeps the (TQ,TK) logits tile lane-dense and matches the
    # v6e/v7x 256x256 MXU.  Small batches fall back to 128x128 tiles.
    if tq is None or tk is None:
        if n <= 512:
            tk = 128
            n_pad = pl.cdiv(n, tk) * tk
            tq = tk
        else:
            tk = 256
            n_pad = pl.cdiv(n, tk) * tk
            tq = 512 if (n_pad % 512 == 0 and d <= 8192) else 256
    else:
        assert (tq % tk == 0) or (tk % tq == 0)
        step = max(tq, tk)
        n_pad = pl.cdiv(n, step) * step

    # ---- one-time wrapper work: normalize, scale, pad, cast, transpose ----
    x = feats.astype(jnp.float32)
    ssq = jnp.sum(x * x, axis=-1, keepdims=True)
    # F.normalize(eps=1e-12); padded rows become exact zero vectors.
    xn = x * lax.rsqrt(jnp.maximum(ssq, 1e-24))
    xn_pad = jnp.pad(xn, ((0, n_pad - n), (0, 0)))

    inv_temp = float(1.0 / temperature)
    q_mat = (xn_pad * inv_temp).astype(mxu_dtype)          # (n_pad, d)
    kt_mat = jnp.transpose(xn_pad).astype(mxu_dtype)       # (d, n_pad)

    lab_pad = jnp.pad(labels.astype(jnp.int32), (0, n_pad - n))
    lab_col = lab_pad.reshape(n_pad, 1)
    lab_row = lab_pad.reshape(1, n_pad)

    num_q = n_pad // tq
    num_k = n_pad // tk
    esize = int(jnp.dtype(mxu_dtype).itemsize)

    kernel = functools.partial(
        _multipos_con_loss_kernel,
        inv_temp=inv_temp, n_real=n, n_pad=n_pad, tq=tq, tk=tk)

    out = pl.pallas_call(
        kernel,
        out_shape=jax.ShapeDtypeStruct((num_q * 8, 128), jnp.float32),
        grid=(num_q, num_k),
        in_specs=[
            pl.BlockSpec((tq, d), lambda qi, ki: (qi, 0)),   # Q (scaled, norm)
            pl.BlockSpec((d, tk), lambda qi, ki: (0, ki)),   # K^T (normalized)
            pl.BlockSpec((tq, 1), lambda qi, ki: (qi, 0)),   # row labels
            pl.BlockSpec((1, tk), lambda qi, ki: (0, ki)),   # col labels
        ],
        out_specs=pl.BlockSpec((8, 128), lambda qi, ki: (qi, 0)),
        scratch_shapes=[
            pltpu.VMEM((tq, 1), jnp.float32),   # l (running sum-exp)
            pltpu.VMEM((tq, 1), jnp.float32),   # s (masked logit sum)
            pltpu.VMEM((tq, 1), jnp.float32),   # c (positive count)
        ],
        compiler_params=pltpu.CompilerParams(
            dimension_semantics=("parallel", "arbitrary"),
            vmem_limit_bytes=48 * 1024 * 1024,
        ),
        cost_estimate=pl.CostEstimate(
            flops=2 * n_pad * n_pad * d,
            transcendentals=n_pad * n_pad + 2 * n_pad,
            bytes_accessed=int(n_pad * d * esize            # Q stream (once)
                               + num_q * n_pad * d * esize  # K stream per row tile
                               + 8 * n_pad                  # labels
                               + num_q * 8 * 128 * 4),      # partial sums
        ),
    )(q_mat, kt_mat, lab_col, lab_row)

    return -jnp.sum(out) / n


def _reference_loss(feats, labels, temperature=0.1):
    """Pure-JAX reference mirroring the PyTorch module (world_size=1)."""
    x = feats.astype(jnp.float32)
    xn = x / jnp.maximum(
        jnp.sqrt(jnp.sum(x * x, axis=-1, keepdims=True)), 1e-12)
    n = x.shape[0]
    logits_mask = 1.0 - jnp.eye(n, dtype=jnp.float32)
    mask = (labels[:, None] == labels[None, :]).astype(jnp.float32) * logits_mask
    logits = xn @ xn.T / temperature
    logits = logits - (1.0 - logits_mask) * 1e9
    logits = logits - jnp.max(logits, axis=-1, keepdims=True)
    logq = logits - jax.scipy.special.logsumexp(logits, axis=-1, keepdims=True)
    p = mask / jnp.maximum(jnp.sum(mask, axis=-1, keepdims=True), 1.0)
    return -jnp.mean(jnp.sum(p * logq, axis=-1))


if __name__ == "__main__":
    key = jax.random.PRNGKey(0)

    # ---- small case: N=8, D=32 (padded path, single tile) ------------------
    k1, k2, k3, k4 = jax.random.split(key, 4)
    N, D = 8, 32
    feats = jax.random.normal(k1, (N, D), dtype=jnp.float32)
    labels = jax.random.randint(k2, (N,), 0, 4, dtype=jnp.int32)

    ref = jax.block_until_ready(_reference_loss(feats, labels, temperature=0.1))

    loss_f32 = jax.block_until_ready(
        multipos_con_loss(feats, labels, temperature=0.1,
                          mxu_dtype=jnp.float32))
    assert np.allclose(np.asarray(loss_f32), np.asarray(ref),
                       rtol=1e-4, atol=1e-4), (loss_f32, ref)

    loss_bf16 = jax.block_until_ready(
        multipos_con_loss(feats, labels, temperature=0.1))
    assert np.allclose(np.asarray(loss_bf16), np.asarray(ref),
                       rtol=0.05, atol=0.1), (loss_bf16, ref)

    # ---- larger case: N=1024, D=64 (rectangular tiles TQ=512, TK=256) ------
    N2, D2 = 1024, 64
    feats2 = jax.random.normal(k3, (N2, D2), dtype=jnp.float32)
    labels2 = jax.random.randint(k4, (N2,), 0, 4, dtype=jnp.int32)

    ref2 = jax.block_until_ready(
        _reference_loss(feats2, labels2, temperature=0.1))

    loss2_f32 = jax.block_until_ready(
        multipos_con_loss(feats2, labels2, temperature=0.1,
                          mxu_dtype=jnp.float32))
    assert np.allclose(np.asarray(loss2_f32), np.asarray(ref2),
                       rtol=1e-4, atol=1e-4), (loss2_f32, ref2)

    loss2_bf16 = jax.block_until_ready(
        multipos_con_loss(feats2, labels2, temperature=0.1))
    assert np.allclose(np.asarray(loss2_bf16), np.asarray(ref2),
                       rtol=0.05, atol=0.1), (loss2_bf16, ref2)

    print("KERNEL_OK")
</pallas_src>

<mosaic_0001>
module attributes {stable_mosaic.version = 11 : i64} {
  func.func @_multipos_con_loss_kernel(%arg0: i32, %arg1: i32, %arg2: memref<128x32xf32, #tpu.memory_space<vmem>>, %arg3: memref<32x128xf32, #tpu.memory_space<vmem>>, %arg4: memref<128x1xi32, #tpu.memory_space<vmem>>, %arg5: memref<1x128xi32, #tpu.memory_space<vmem>>, %arg6: memref<8x128xf32, #tpu.memory_space<vmem>>, %arg7: memref<128x1xf32, #tpu.memory_space<vmem>>, %arg8: memref<128x1xf32, #tpu.memory_space<vmem>>, %arg9: memref<128x1xf32, #tpu.memory_space<vmem>>) attributes {dimension_semantics = [#tpu.dimension_semantics<parallel>, #tpu.dimension_semantics<arbitrary>], iteration_bounds = array<i64: 1, 1>, scalar_prefetch = 0 : i64, scratch_operands = 3 : i64, tpu.core_type = #tpu.core_type<tc>, window_params = [{transform_indices = @transform_0, window_bounds = array<i64: 128, 32>}, {transform_indices = @transform_1, window_bounds = array<i64: 32, 128>}, {transform_indices = @transform_2, window_bounds = array<i64: 128, 1>}, {transform_indices = @transform_3, window_bounds = array<i64: 1, 128>}, {transform_indices = @transform_4, window_bounds = array<i64: 8, 128>}]} {
    %c0_i32 = arith.constant 0 : i32
    %0 = arith.cmpi eq, %arg1, %c0_i32 : i32
    %1 = arith.extui %0 : i1 to i32
    %c0_i32_0 = arith.constant 0 : i32
    %2 = arith.cmpi ne, %1, %c0_i32_0 : i32
    scf.if %2 {
      %cst_32 = arith.constant 0.000000e+00 : f32
      %57 = vector.broadcast %cst_32 : f32 to vector<128x1xf32>
      %c0_33 = arith.constant 0 : index
      %c0_34 = arith.constant 0 : index
      %58 = vector.load %arg7[%c0_33, %c0_34] : memref<128x1xf32, #tpu.memory_space<vmem>>, vector<128x1xf32>
      tpu.vector_store %arg7[%c0_33, %c0_34], %57 {strides = array<i32>} : memref<128x1xf32, #tpu.memory_space<vmem>>, vector<128x1xf32>,
      %cst_35 = arith.constant 0.000000e+00 : f32
      %59 = vector.broadcast %cst_35 : f32 to vector<128x1xf32>
      %c0_36 = arith.constant 0 : index
      %c0_37 = arith.constant 0 : index
      %60 = vector.load %arg8[%c0_36, %c0_37] : memref<128x1xf32, #tpu.memory_space<vmem>>, vector<128x1xf32>
      tpu.vector_store %arg8[%c0_36, %c0_37], %59 {strides = array<i32>} : memref<128x1xf32, #tpu.memory_space<vmem>>, vector<128x1xf32>,
      %cst_38 = arith.constant 0.000000e+00 : f32
      %61 = vector.broadcast %cst_38 : f32 to vector<128x1xf32>
      %c0_39 = arith.constant 0 : index
      %c0_40 = arith.constant 0 : index
      %62 = vector.load %arg9[%c0_39, %c0_40] : memref<128x1xf32, #tpu.memory_space<vmem>>, vector<128x1xf32>
      tpu.vector_store %arg9[%c0_39, %c0_40], %61 {strides = array<i32>} : memref<128x1xf32, #tpu.memory_space<vmem>>, vector<128x1xf32>,
    } else {
    }
    %c0 = arith.constant 0 : index
    %c0_1 = arith.constant 0 : index
    %3 = vector.load %arg2[%c0, %c0_1] : memref<128x32xf32, #tpu.memory_space<vmem>>, vector<128x32xf32>
    %c0_2 = arith.constant 0 : index
    %c0_3 = arith.constant 0 : index
    %4 = vector.load %arg3[%c0_2, %c0_3] : memref<32x128xf32, #tpu.memory_space<vmem>>, vector<32x128xf32>
    %cst = arith.constant dense<0.000000e+00> : vector<128x128xf32>
    %5 = tpu.matmul %3, %4, %cst {dimension_numbers = #tpu.dot_dimension_numbers<[1], [0], [0], [1], [0, 0, 1, 1], [], []>} : vector<128x32xf32>, vector<32x128xf32>, vector<128x128xf32> -> vector<128x128xf32>
    %c128_i32 = arith.constant 128 : i32
    %6 = arith.muli %arg0, %c128_i32 : i32
    %7 = tpu.iota {dimensions = array<i32: 0>} : vector<128x128xi32>
    %8 = vector.broadcast %6 : i32 to vector<128x128xi32>
    %9 = arith.addi %8, %7 : vector<128x128xi32>
    %c128_i32_4 = arith.constant 128 : i32
    %10 = arith.muli %arg1, %c128_i32_4 : i32
    %11 = tpu.iota {dimensions = array<i32: 1>} : vector<128x128xi32>
    %12 = vector.broadcast %10 : i32 to vector<128x128xi32>
    %13 = arith.addi %12, %11 : vector<128x128xi32>
    %14 = arith.cmpi eq, %9, %13 : vector<128x128xi32>
    %c0_5 = arith.constant 0 : index
    %c0_6 = arith.constant 0 : index
    %15 = vector.load %arg4[%c0_5, %c0_6] : memref<128x1xi32, #tpu.memory_space<vmem>>, vector<128x1xi32>
    %c0_7 = arith.constant 0 : index
    %c0_8 = arith.constant 0 : index
    %16 = vector.load %arg5[%c0_7, %c0_8] : memref<1x128xi32, #tpu.memory_space<vmem>>, vector<1x128xi32>
    %17 = vector.broadcast %15 : vector<128x1xi32> to vector<128x128xi32>
    %18 = vector.broadcast %16 : vector<1x128xi32> to vector<128x128xi32>
    %19 = arith.cmpi eq, %17, %18 : vector<128x128xi32>
    %c8_i32 = arith.constant 8 : i32
    %20 = vector.broadcast %c8_i32 : i32 to vector<128x128xi32>
    %21 = arith.cmpi slt, %13, %20 : vector<128x128xi32>
    %c8_i32_9 = arith.constant 8 : i32
    %22 = vector.broadcast %c8_i32_9 : i32 to vector<128x128xi32>
    %23 = arith.cmpi slt, %9, %22 : vector<128x128xi32>
    %cst_10 = arith.constant dense<true> : vector<128x128xi1>
    %24 = arith.xori %21, %cst_10 : vector<128x128xi1>
    %25 = arith.ori %14, %24 : vector<128x128xi1>
    %cst_11 = arith.constant dense<true> : vector<128x128xi1>
    %26 = arith.xori %14, %cst_11 : vector<128x128xi1>
    %27 = arith.andi %19, %26 : vector<128x128xi1>
    %28 = arith.andi %27, %21 : vector<128x128xi1>
    %29 = arith.andi %28, %23 : vector<128x128xi1>
    %cst_12 = arith.constant -1.000000e+09 : f32
    %30 = vector.broadcast %cst_12 : f32 to vector<128x128xf32>
    %31 = arith.select %25, %30, %5 : vector<128x128xi1>, vector<128x128xf32>
    %c0_13 = arith.constant 0 : index
    %c0_14 = arith.constant 0 : index
    %32 = vector.load %arg7[%c0_13, %c0_14] : memref<128x1xf32, #tpu.memory_space<vmem>>, vector<128x1xf32>
    %cst_15 = arith.constant 1.000000e+01 : f32
    %33 = vector.broadcast %cst_15 : f32 to vector<128x128xf32>
    %34 = arith.subf %31, %33 : vector<128x128xf32>
    %35 = math.exp %34 : vector<128x128xf32>
    %cst_16 = arith.constant dense<0.000000e+00> : vector<128xf32>
    %36 = vector.multi_reduction <add>, %35, %cst_16 [1] : vector<128x128xf32> to vector<128xf32>
    %37 = vector.shape_cast %36 : vector<128xf32> to vector<128x1xf32>
    %38 = arith.addf %32, %37 : vector<128x1xf32>
    %c0_17 = arith.constant 0 : index
    %c0_18 = arith.constant 0 : index
    %39 = vector.load %arg7[%c0_17, %c0_18] : memref<128x1xf32, #tpu.memory_space<vmem>>, vector<128x1xf32>
    tpu.vector_store %arg7[%c0_17, %c0_18], %38 {strides = array<i32>} : memref<128x1xf32, #tpu.memory_space<vmem>>, vector<128x1xf32>,
    %c0_19 = arith.constant 0 : index
    %c0_20 = arith.constant 0 : index
    %40 = vector.load %arg8[%c0_19, %c0_20] : memref<128x1xf32, #tpu.memory_space<vmem>>, vector<128x1xf32>
    %cst_21 = arith.constant 0.000000e+00 : f32
    %41 = vector.broadcast %cst_21 : f32 to vector<128x128xf32>
    %42 = arith.select %29, %31, %41 : vector<128x128xi1>, vector<128x128xf32>
    %cst_22 = arith.constant dense<0.000000e+00> : vector<128xf32>
    %43 = vector.multi_reduction <add>, %42, %cst_22 [1] : vector<128x128xf32> to vector<128xf32>
    %44 = vector.shape_cast %43 : vector<128xf32> to vector<128x1xf32>
    %45 = arith.addf %40, %44 : vector<128x1xf32>
    %c0_23 = arith.constant 0 : index
    %c0_24 = arith.constant 0 : index
    %46 = vector.load %arg8[%c0_23, %c0_24] : memref<128x1xf32, #tpu.memory_space<vmem>>, vector<128x1xf32>
    tpu.vector_store %arg8[%c0_23, %c0_24], %45 {strides = array<i32>} : memref<128x1xf32, #tpu.memory_space<vmem>>, vector<128x1xf32>,
    %c0_25 = arith.constant 0 : index
    %c0_26 = arith.constant 0 : index
    %47 = vector.load %arg9[%c0_25, %c0_26] : memref<128x1xf32, #tpu.memory_space<vmem>>, vector<128x1xf32>
    %48 = arith.extui %29 : vector<128x128xi1> to vector<128x128xi32>
    %49 = arith.sitofp %48 : vector<128x128xi32> to vector<128x128xf32>
    %cst_27 = arith.constant dense<0.000000e+00> : vector<128xf32>
    %50 = vector.multi_reduction <add>, %49, %cst_27 [1] : vector<128x128xf32> to vector<128xf32>
    %51 = vector.shape_cast %50 : vector<128xf32> to vector<128x1xf32>
    %52 = arith.addf %47, %51 : vector<128x1xf32>
    %c0_28 = arith.constant 0 : index
    %c0_29 = arith.constant 0 : index
    %53 = vector.load %arg9[%c0_28, %c0_29] : memref<128x1xf32, #tpu.memory_space<vmem>>, vector<128x1xf32>
    tpu.vector_store %arg9[%c0_28, %c0_29], %52 {strides = array<i32>} : memref<128x1xf32, #tpu.memory_space<vmem>>, vector<128x1xf32>,
    %c0_i32_30 = arith.constant 0 : i32
    %54 = arith.cmpi eq, %arg1, %c0_i32_30 : i32
    %55 = arith.extui %54 : i1 to i32
    %c0_i32_31 = arith.constant 0 : i32
    %56 = arith.cmpi ne, %55, %c0_i32_31 : i32
    scf.if %56 {
      %c0_32 = arith.constant 0 : index
      %c0_33 = arith.constant 0 : index
      %57 = vector.load %arg7[%c0_32, %c0_33] : memref<128x1xf32, #tpu.memory_space<vmem>>, vector<128x1xf32>
      %58 = math.log %57 : vector<128x1xf32>
      %cst_34 = arith.constant 1.000000e+01 : f32
      %59 = vector.broadcast %cst_34 : f32 to vector<128x1xf32>
      %60 = arith.addf %59, %58 : vector<128x1xf32>
      %c0_35 = arith.constant 0 : index
      %c0_36 = arith.constant 0 : index
      %61 = vector.load %arg9[%c0_35, %c0_36] : memref<128x1xf32, #tpu.memory_space<vmem>>, vector<128x1xf32>
      %cst_37 = arith.constant 0.000000e+00 : f32
      %62 = vector.broadcast %cst_37 : f32 to vector<128x1xf32>
      %63 = arith.cmpf ogt, %61, %62 : vector<128x1xf32>
      %c0_38 = arith.constant 0 : index
      %c0_39 = arith.constant 0 : index
      %64 = vector.load %arg8[%c0_38, %c0_39] : memref<128x1xf32, #tpu.memory_space<vmem>>, vector<128x1xf32>
      %65 = arith.mulf %61, %60 : vector<128x1xf32>
      %66 = arith.subf %64, %65 : vector<128x1xf32>
      %cst_40 = arith.constant 1.000000e+00 : f32
      %67 = vector.broadcast %cst_40 : f32 to vector<128x1xf32>
      %68 = arith.maximumf %61, %67 : vector<128x1xf32>
      %69 = arith.divf %66, %68 : vector<128x1xf32>
      %cst_41 = arith.constant 0.000000e+00 : f32
      %70 = vector.broadcast %cst_41 : f32 to vector<128x1xf32>
      %71 = arith.select %63, %69, %70 : vector<128x1xi1>, vector<128x1xf32>
      %72 = vector.shape_cast %71 : vector<128x1xf32> to vector<1x128x1xf32>
      %cst_42 = arith.constant dense<0.000000e+00> : vector<1xf32>
      %73 = vector.multi_reduction <add>, %72, %cst_42 [1, 2] : vector<1x128x1xf32> to vector<1xf32>
      %74 = vector.shape_cast %73 : vector<1xf32> to vector<1x1x1xf32>
      %75 = vector.extract %74[0, 0, 0] : f32 from vector<1x1x1xf32>
      %76 = tpu.iota {dimensions = array<i32: 0>} : vector<8x128xi32>
      %77 = tpu.iota {dimensions = array<i32: 1>} : vector<8x128xi32>
      %c0_i32_43 = arith.constant 0 : i32
      %78 = vector.broadcast %c0_i32_43 : i32 to vector<8x128xi32>
      %79 = arith.cmpi eq, %76, %78 : vector<8x128xi32>
      %c0_i32_44 = arith.constant 0 : i32
      %80 = vector.broadcast %c0_i32_44 : i32 to vector<8x128xi32>
      %81 = arith.cmpi eq, %77, %80 : vector<8x128xi32>
      %82 = arith.andi %79, %81 : vector<8x128xi1>
      %cst_45 = arith.constant 0.000000e+00 : f32
      %83 = vector.broadcast %75 : f32 to vector<8x128xf32>
      %84 = vector.broadcast %cst_45 : f32 to vector<8x128xf32>
      %85 = arith.select %82, %83, %84 : vector<8x128xi1>, vector<8x128xf32>
      %c0_46 = arith.constant 0 : index
      %c0_47 = arith.constant 0 : index
      %86 = vector.load %arg6[%c0_46, %c0_47] : memref<8x128xf32, #tpu.memory_space<vmem>>, vector<8x128xf32>
      tpu.vector_store %arg6[%c0_46, %c0_47], %85 {strides = array<i32>} : memref<8x128xf32, #tpu.memory_space<vmem>>, vector<8x128xf32>,
    } else {
    }
    return
  }
  func.func @transform_0(%arg0: i32, %arg1: i32) -> (i32, i32) {
    %c0_i32 = arith.constant 0 : i32
    %c0_i32_0 = arith.constant 0 : i32
    return %arg0, %c0_i32 : i32, i32
  }
  func.func @transform_1(%arg0: i32, %arg1: i32) -> (i32, i32) {
    %c0_i32 = arith.constant 0 : i32
    %c0_i32_0 = arith.constant 0 : i32
    return %c0_i32, %arg1 : i32, i32
  }
  func.func @transform_2(%arg0: i32, %arg1: i32) -> (i32, i32) {
    %c0_i32 = arith.constant 0 : i32
    %c0_i32_0 = arith.constant 0 : i32
    return %arg0, %c0_i32 : i32, i32
  }
  func.func @transform_3(%arg0: i32, %arg1: i32) -> (i32, i32) {
    %c0_i32 = arith.constant 0 : i32
    %c0_i32_0 = arith.constant 0 : i32
    return %c0_i32, %arg1 : i32, i32
  }
  func.func @transform_4(%arg0: i32, %arg1: i32) -> (i32, i32) {
    %c0_i32 = arith.constant 0 : i32
    %c0_i32_0 = arith.constant 0 : i32
    return %arg0, %c0_i32 : i32, i32
  }
}

</mosaic_0001>

<llo_original>
// kernel: tpu_custom_call.1
$region0: #{tpu_custom_call.1}
  #allocation0 [shape = 'u32[]', space=smem, size = 0x4, offset = 0x4, fixed_abs, tag = 'smem constant byte address 0x4 - core index']
  #allocation1 [shape = 'u32[144,128]{1,0:T(1,128)}', space=vmem, size = 0x12000, scoped, tag = 'internal scratch']
  #allocation2 [shape = 'f32[128,1]{1,0:T(8,128)}', space=vmem, size = 0x10000, scoped, tag = 'scratch operand']
  #allocation3 [shape = 'f32[128,1]{1,0:T(8,128)}', space=vmem, size = 0x10000, scoped, tag = 'scratch operand']
  #allocation4 [shape = 'f32[128,1]{1,0:T(8,128)}', space=vmem, size = 0x10000, scoped, tag = 'scratch operand']
  %s0 = inlined_call_operand.vmem [shape: f32[128,32], index: 0, kind: input, shape index: {}]
  %s1 = inlined_call_operand.vmem [shape: f32[32,128], index: 1, kind: input, shape index: {}]
  %s2 = inlined_call_operand.vmem [shape: s32[128,1], index: 2, kind: input, shape index: {}]
  %s3 = inlined_call_operand.vmem [shape: s32[1,128], index: 3, kind: input, shape index: {}]
  %s4 = inlined_call_operand.hbm [shape: f32[8,128], index: 4, kind: output, shape index: {}]
  %s5 = sld [smem:[#allocation0]]
  $region34: #{tpu_custom_call.1} parent=0
    _
  %s7 = ssub.s32 1, %s5
  %s8 = scalar_select 0, %s7, %s5
  $region1: #{tpu_custom_call.1} parent=0
    #allocation5 [shape = 'u8[4096]{0}', space=vmem, size = 0x1000, scoped, tag = 'output window, operand 0, single buffered']
    #allocation6 [shape = 's32[1]{0}', space=sflag, size = 0x4, scoped, tag = 'scoped memory for tpu_custom_call.1']
    %9 = vsyncpa [#allocation6], 0
    // Predicated region
    $region2: #{tpu_custom_call.1} parent=1 // pred_check
      _
    $region3: #{tpu_custom_call.1} parent=1 // pred_check_branch
      %11 = sbr.rel (0) target = $region5
    $region4: #{tpu_custom_call.1} parent=1 // pred_region
      _
    $region5: #{tpu_custom_call.1} parent=1 // pred_fallthru
      _
    // Predicated region
    $region6: #{tpu_custom_call.1} parent=1 // pred_check
      _
    $region7: #{tpu_custom_call.1} parent=1 // pred_check_branch
      %13 = sbr.rel (0) target = $region9
    $region8: #{tpu_custom_call.1} parent=1 // pred_region
      _
    $region9: #{tpu_custom_call.1} parent=1 // pred_fallthru
      _
    // Predicated region
    $region10: #{tpu_custom_call.1} parent=1 // pred_check
      _
    $region11: #{tpu_custom_call.1} parent=1 // pred_check_branch
      %15 = sbr.rel (0) target = $region13
    $region12: #{tpu_custom_call.1} parent=1 // pred_region
      _
    $region13: #{tpu_custom_call.1} parent=1 // pred_fallthru
      _
    // Predicated region
    $region14: #{tpu_custom_call.1} parent=1 // pred_check
      _
    $region15: #{tpu_custom_call.1} parent=1 // pred_check_branch
      %17 = sbr.rel (0) target = $region17
    $region16: #{tpu_custom_call.1} parent=1 // pred_region
      _
    $region17: #{tpu_custom_call.1} parent=1 // pred_fallthru
      _
    %p18 = scmp.eq.s32.totalorder 0, 0
    // Predicated region
    $region18: #{tpu_custom_call.1} parent=1 // pred_check
      %p19 = pneg %p18
    $region19: #{tpu_custom_call.1} parent=1 // pred_check_branch
      %21 = sbr.rel (%p19) target = $region21
    $region20: #{tpu_custom_call.1} parent=1 // pred_region
      %vm22 = vcmask 7168
      %23 = vst.msk [vmem:[#allocation2] sm:$0xff] %vm22, 0.0
      %24 = vst.msk [vmem:[#allocation2 + $0x8] sm:$0xff] %vm22, 0.0
      %25 = vst.msk [vmem:[#allocation2 + $0x10] sm:$0xff] %vm22, 0.0
      %26 = vst.msk [vmem:[#allocation2 + $0x18] sm:$0xff] %vm22, 0.0
      %27 = vst.msk [vmem:[#allocation2 + $0x20] sm:$0xff] %vm22, 0.0
      %28 = vst.msk [vmem:[#allocation2 + $0x28] sm:$0xff] %vm22, 0.0
      %29 = vst.msk [vmem:[#allocation2 + $0x30] sm:$0xff] %vm22, 0.0
      %30 = vst.msk [vmem:[#allocation2 + $0x38] sm:$0xff] %vm22, 0.0
      %31 = vst.msk [vmem:[#allocation2 + $0x40] sm:$0xff] %vm22, 0.0
      %32 = vst.msk [vmem:[#allocation2 + $0x48] sm:$0xff] %vm22, 0.0
      %33 = vst.msk [vmem:[#allocation2 + $0x50] sm:$0xff] %vm22, 0.0
      %34 = vst.msk [vmem:[#allocation2 + $0x58] sm:$0xff] %vm22, 0.0
      %35 = vst.msk [vmem:[#allocation2 + $0x60] sm:$0xff] %vm22, 0.0
      %36 = vst.msk [vmem:[#allocation2 + $0x68] sm:$0xff] %vm22, 0.0
      %37 = vst.msk [vmem:[#allocation2 + $0x70] sm:$0xff] %vm22, 0.0
      %38 = vst.msk [vmem:[#allocation2 + $0x78] sm:$0xff] %vm22, 0.0
      %39 = vst.msk [vmem:[#allocation3] sm:$0xff] %vm22, 0.0
      %40 = vst.msk [vmem:[#allocation3 + $0x8] sm:$0xff] %vm22, 0.0
      %41 = vst.msk [vmem:[#allocation3 + $0x10] sm:$0xff] %vm22, 0.0
      %42 = vst.msk [vmem:[#allocation3 + $0x18] sm:$0xff] %vm22, 0.0
      %43 = vst.msk [vmem:[#allocation3 + $0x20] sm:$0xff] %vm22, 0.0
      %44 = vst.msk [vmem:[#allocation3 + $0x28] sm:$0xff] %vm22, 0.0
      %45 = vst.msk [vmem:[#allocation3 + $0x30] sm:$0xff] %vm22, 0.0
      %46 = vst.msk [vmem:[#allocation3 + $0x38] sm:$0xff] %vm22, 0.0
      %47 = vst.msk [vmem:[#allocation3 + $0x40] sm:$0xff] %vm22, 0.0
      %48 = vst.msk [vmem:[#allocation3 + $0x48] sm:$0xff] %vm22, 0.0
      %49 = vst.msk [vmem:[#allocation3 + $0x50] sm:$0xff] %vm22, 0.0
      %50 = vst.msk [vmem:[#allocation3 + $0x58] sm:$0xff] %vm22, 0.0
      %51 = vst.msk [vmem:[#allocation3 + $0x60] sm:$0xff] %vm22, 0.0
      %52 = vst.msk [vmem:[#allocation3 + $0x68] sm:$0xff] %vm22, 0.0
      %53 = vst.msk [vmem:[#allocation3 + $0x70] sm:$0xff] %vm22, 0.0
      %54 = vst.msk [vmem:[#allocation3 + $0x78] sm:$0xff] %vm22, 0.0
      %55 = vst.msk [vmem:[#allocation4] sm:$0xff] %vm22, 0.0
      %56 = vst.msk [vmem:[#allocation4 + $0x8] sm:$0xff] %vm22, 0.0
      %57 = vst.msk [vmem:[#allocation4 + $0x10] sm:$0xff] %vm22, 0.0
      %58 = vst.msk [vmem:[#allocation4 + $0x18] sm:$0xff] %vm22, 0.0
      %59 = vst.msk [vmem:[#allocation4 + $0x20] sm:$0xff] %vm22, 0.0
      %60 = vst.msk [vmem:[#allocation4 + $0x28] sm:$0xff] %vm22, 0.0
      %61 = vst.msk [vmem:[#allocation4 + $0x30] sm:$0xff] %vm22, 0.0
      %62 = vst.msk [vmem:[#allocation4 + $0x38] sm:$0xff] %vm22, 0.0
      %63 = vst.msk [vmem:[#allocation4 + $0x40] sm:$0xff] %vm22, 0.0
      %64 = vst.msk [vmem:[#allocation4 + $0x48] sm:$0xff] %vm22, 0.0
      %65 = vst.msk [vmem:[#allocation4 + $0x50] sm:$0xff] %vm22, 0.0
      %66 = vst.msk [vmem:[#allocation4 + $0x58] sm:$0xff] %vm22, 0.0
      %67 = vst.msk [vmem:[#allocation4 + $0x60] sm:$0xff] %vm22, 0.0
      %68 = vst.msk [vmem:[#allocation4 + $0x68] sm:$0xff] %vm22, 0.0
      %69 = vst.msk [vmem:[#allocation4 + $0x70] sm:$0xff] %vm22, 0.0
      %70 = vst.msk [vmem:[#allocation4 + $0x78] sm:$0xff] %vm22, 0.0
    $region21: #{tpu_custom_call.1} parent=1 // pred_fallthru
      _
    %v71 = vld [vmem:[%s0] sm:$0xff]
    %v72 = vld [vmem:[%s0 + $0x8] sm:$0xff]
    %v73 = vld [vmem:[%s0 + $0x10] sm:$0xff]
    %v74 = vld [vmem:[%s0 + $0x18] sm:$0xff]
    %v75 = vld [vmem:[%s0 + $0x20] sm:$0xff]
    %v76 = vld [vmem:[%s0 + $0x28] sm:$0xff]
    %v77 = vld [vmem:[%s0 + $0x30] sm:$0xff]
    %v78 = vld [vmem:[%s0 + $0x38] sm:$0xff]
    %v79 = vld [vmem:[%s0 + $0x40] sm:$0xff]
    %v80 = vld [vmem:[%s0 + $0x48] sm:$0xff]
    %v81 = vld [vmem:[%s0 + $0x50] sm:$0xff]
    %v82 = vld [vmem:[%s0 + $0x58] sm:$0xff]
    %v83 = vld [vmem:[%s0 + $0x60] sm:$0xff]
    %v84 = vld [vmem:[%s0 + $0x68] sm:$0xff]
    %v85 = vld [vmem:[%s0 + $0x70] sm:$0xff]
    %v86 = vld [vmem:[%s0 + $0x78] sm:$0xff]
    %v87 = vld [vmem:[%s1] sm:$0xff]
    %v88 = vld [vmem:[%s1 + $0x8] sm:$0xff]
    %v89 = vld [vmem:[%s1 + $0x10] sm:$0xff]
    %v90 = vld [vmem:[%s1 + $0x18] sm:$0xff]
    %vm91 = vcmask 261120
    %v93 = vsel %vm91, %v71, 0
    %v96 = vsel %vm91, %v72, 0
    %v99 = vsel %vm91, %v73, 0
    %v102 = vsel %vm91, %v74, 0
    %v105 = vsel %vm91, %v75, 0
    %v108 = vsel %vm91, %v76, 0
    %v111 = vsel %vm91, %v77, 0
    %v114 = vsel %vm91, %v78, 0
    %v117 = vsel %vm91, %v79, 0
    %v120 = vsel %vm91, %v80, 0
    %v123 = vsel %vm91, %v81, 0
    %v126 = vsel %vm91, %v82, 0
    %v129 = vsel %vm91, %v83, 0
    %v132 = vsel %vm91, %v84, 0
    %v135 = vsel %vm91, %v85, 0
    %v138 = vsel %vm91, %v86, 0
    %140 = vmatprep.subr.mxu0 0.0
    %141 = vmatpush1.msra.mxu0 0.0
    %142 = vmatprep.subr.mxu0 0.0
    %143 = vmatpush1.msra.mxu0 0.0
    %144 = vmatprep.subr.mxu0 0.0
    %145 = vmatpush1.msra.mxu0 0.0
    %146 = vmatprep.subr.mxu0 0.0
    %147 = vmatpush1.msra.mxu0 0.0
    %148 = vmatprep.subr.mxu0 0.0
    %149 = vmatpush1.msra.mxu0 0.0
    %150 = vmatprep.subr.mxu0 0.0
    %151 = vmatpush1.msra.mxu0 0.0
    %152 = vmatprep.subr.mxu0 0.0
    %153 = vmatpush1.msra.mxu0 0.0
    %154 = vmatprep.subr.mxu0 0.0
    %155 = vmatpush1.msra.mxu0 0.0
    %156 = vmatprep.subr.mxu0 0.0
    %157 = vmatpush1.msra.mxu0 0.0
    %158 = vmatprep.subr.mxu0 0.0
    %159 = vmatpush1.msra.mxu0 0.0
    %160 = vmatprep.subr.mxu0 0.0
    %161 = vmatpush1.msra.mxu0 0.0
    %162 = vmatprep.subr.mxu0 0.0
    %163 = vmatpush1.msra.mxu0 0.0
    %164 = vmatprep.subr.mxu0 0.0
    %165 = vmatpush1.msra.mxu0 %v90
    %166 = vmatprep.subr.mxu0 0.0
    %167 = vmatpush1.msra.mxu0 %v89
    %168 = vmatprep.subr.mxu0 0.0
    %169 = vmatpush1.msra.mxu0 %v88
    %170 = vmatprep.subr.mxu0 0.0
    %171 = vmatpush1.msra.mxu0 %v87
    %172 = vmatprep.subr.mxu0 0.0
    %173 = vmatpush2.msra.mxu0 0.0
    %174 = vmatprep.subr.mxu0 0.0
    %175 = vmatpush2.msra.mxu0 0.0
    %176 = vmatprep.subr.mxu0 0.0
    %177 = vmatpush2.msra.mxu0 0.0
    %178 = vmatprep.subr.mxu0 0.0
    %179 = vmatpush2.msra.mxu0 0.0
    %180 = vmatprep.subr.mxu0 0.0
    %181 = vmatpush2.msra.mxu0 0.0
    %182 = vmatprep.subr.mxu0 0.0
    %183 = vmatpush2.msra.mxu0 0.0
    %184 = vmatprep.subr.mxu0 0.0
    %185 = vmatpush2.msra.mxu0 0.0
    %186 = vmatprep.subr.mxu0 0.0
    %187 = vmatpush2.msra.mxu0 0.0
    %188 = vmatprep.subr.mxu0 0.0
    %189 = vmatpush2.msra.mxu0 0.0
    %190 = vmatprep.subr.mxu0 0.0
    %191 = vmatpush2.msra.mxu0 0.0
    %192 = vmatprep.subr.mxu0 0.0
    %193 = vmatpush2.msra.mxu0 0.0
    %194 = vmatprep.subr.mxu0 0.0
    %195 = vmatpush2.msra.mxu0 0.0
    %196 = vmatprep.subr.mxu0 0.0
    %197 = vmatpush2.msra.mxu0 0.0
    %198 = vmatprep.subr.mxu0 0.0
    %199 = vmatpush2.msra.mxu0 0.0
    %200 = vmatprep.subr.mxu0 0.0
    %201 = vmatpush2.msra.mxu0 0.0
    %202 = vmatprep.subr.mxu0 0.0
    %203 = vmatpush2.msra.mxu0 0.0
    %204 = vmatprep.mubr.f32.mxu0 0.0
    %205 = vmatmul.mubr.f32.gmra.mxu0 %v93
    %v206 = vpop.f32.mrf.mxu0
    %v207 = vadd.f32 0.0, %v206
    %v208 = vpop.f32.mrf.mxu0
    %209 = vmatprep.mubr.f32.mxu0 0.0
    %210 = vmatmul.mubr.f32.gmra.mxu0 %v96
    %v211 = vpop.f32.mrf.mxu0
    %v212 = vadd.f32 0.0, %v211
    %v213 = vpop.f32.mrf.mxu0
    %214 = vmatprep.mubr.f32.mxu0 0.0
    %215 = vmatmul.mubr.f32.gmra.mxu0 %v99
    %v216 = vpop.f32.mrf.mxu0
    %v217 = vadd.f32 0.0, %v216
    %v218 = vpop.f32.mrf.mxu0
    %219 = vmatprep.mubr.f32.mxu0 0.0
    %220 = vmatmul.mubr.f32.gmra.mxu0 %v102
    %v221 = vpop.f32.mrf.mxu0
    %v222 = vadd.f32 0.0, %v221
    %v223 = vpop.f32.mrf.mxu0
    %224 = vmatprep.mubr.f32.mxu0 0.0
    %225 = vmatmul.mubr.f32.gmra.mxu0 %v105
    %v226 = vpop.f32.mrf.mxu0
    %v227 = vadd.f32 0.0, %v226
    %v228 = vpop.f32.mrf.mxu0
    %229 = vmatprep.mubr.f32.mxu0 0.0
    %230 = vmatmul.mubr.f32.gmra.mxu0 %v108
    %v231 = vpop.f32.mrf.mxu0
    %v232 = vadd.f32 0.0, %v231
    %v233 = vpop.f32.mrf.mxu0
    %234 = vmatprep.mubr.f32.mxu0 0.0
    %235 = vmatmul.mubr.f32.gmra.mxu0 %v111
    %v236 = vpop.f32.mrf.mxu0
    %v237 = vadd.f32 0.0, %v236
    %v238 = vpop.f32.mrf.mxu0
    %239 = vmatprep.mubr.f32.mxu0 0.0
    %240 = vmatmul.mubr.f32.gmra.mxu0 %v114
    %v241 = vpop.f32.mrf.mxu0
    %v242 = vadd.f32 0.0, %v241
    %v243 = vpop.f32.mrf.mxu0
    %244 = vmatprep.mubr.f32.mxu0 0.0
    %245 = vmatmul.mubr.f32.gmra.mxu0 %v117
    %v246 = vpop.f32.mrf.mxu0
    %v247 = vadd.f32 0.0, %v246
    %v248 = vpop.f32.mrf.mxu0
    %249 = vmatprep.mubr.f32.mxu0 0.0
    %250 = vmatmul.mubr.f32.gmra.mxu0 %v120
    %v251 = vpop.f32.mrf.mxu0
    %v252 = vadd.f32 0.0, %v251
    %v253 = vpop.f32.mrf.mxu0
    %254 = vmatprep.mubr.f32.mxu0 0.0
    %255 = vmatmul.mubr.f32.gmra.mxu0 %v123
    %v256 = vpop.f32.mrf.mxu0
    %v257 = vadd.f32 0.0, %v256
    %v258 = vpop.f32.mrf.mxu0
    %259 = vmatprep.mubr.f32.mxu0 0.0
    %260 = vmatmul.mubr.f32.gmra.mxu0 %v126
    %v261 = vpop.f32.mrf.mxu0
    %v262 = vadd.f32 0.0, %v261
    %v263 = vpop.f32.mrf.mxu0
    %264 = vmatprep.mubr.f32.mxu0 0.0
    %265 = vmatmul.mubr.f32.gmra.mxu0 %v129
    %v266 = vpop.f32.mrf.mxu0
    %v267 = vadd.f32 0.0, %v266
    %v268 = vpop.f32.mrf.mxu0
    %269 = vmatprep.mubr.f32.mxu0 0.0
    %270 = vmatmul.mubr.f32.gmra.mxu0 %v132
    %v271 = vpop.f32.mrf.mxu0
    %v272 = vadd.f32 0.0, %v271
    %v273 = vpop.f32.mrf.mxu0
    %274 = vmatprep.mubr.f32.mxu0 0.0
    %275 = vmatmul.mubr.f32.gmra.mxu0 %v135
    %v276 = vpop.f32.mrf.mxu0
    %v277 = vadd.f32 0.0, %v276
    %v278 = vpop.f32.mrf.mxu0
    %279 = vmatprep.mubr.f32.mxu0 0.0
    %280 = vmatmul.mubr.f32.gmra.mxu0 %v138
    %v281 = vpop.f32.mrf.mxu0
    %v282 = vadd.f32 0.0, %v281
    %v283 = vpop.f32.mrf.mxu0
    %284 = vdwg.mxu0
    %s285 = smul.u32 0, 128
    %v286 = vlaneseq
    %v287 = vshrl.u32 %v286, 7
    %v288 = vadd.s32 %v287, 8
    %v289 = vadd.s32 %v287, 16
    %v290 = vadd.s32 %v287, 24
    %v291 = vadd.s32 %v287, 32
    %v292 = vadd.s32 %v287, 40
    %v293 = vadd.s32 %v287, 48
    %v294 = vadd.s32 %v287, 56
    %v295 = vadd.s32 %v287, 64
    %v296 = vadd.s32 %v287, 72
    %v297 = vadd.s32 %v287, 80
    %v298 = vadd.s32 %v287, 88
    %v299 = vadd.s32 %v287, 96
    %v300 = vadd.s32 %v287, 104
    %v301 = vadd.s32 %v287, 112
    %v302 = vadd.s32 %v287, 120
    %v303 = vstv %s285
    %v304 = vadd.s32 %v303, %v287
    %v305 = vadd.s32 %v303, %v288
    %v306 = vadd.s32 %v303, %v289
    %v307 = vadd.s32 %v303, %v290
    %v308 = vadd.s32 %v303, %v291
    %v309 = vadd.s32 %v303, %v292
    %v310 = vadd.s32 %v303, %v293
    %v311 = vadd.s32 %v303, %v294
    %v312 = vadd.s32 %v303, %v295
    %v313 = vadd.s32 %v303, %v296
    %v314 = vadd.s32 %v303, %v297
    %v315 = vadd.s32 %v303, %v298
    %v316 = vadd.s32 %v303, %v299
    %v317 = vadd.s32 %v303, %v300
    %v318 = vadd.s32 %v303, %v301
    %v319 = vadd.s32 %v303, %v302
    %s320 = smul.u32 0, 128
    %v321 = vlaneseq
    %v322 = vand.u32 %v321, 127
    %v323 = vstv %s320
    %v324 = vadd.s32 %v323, %v322
    %vm325 = vcmp.eq.s32.totalorder %v304, %v324
    %vm326 = vcmp.eq.s32.totalorder %v305, %v324
    %vm327 = vcmp.eq.s32.totalorder %v306, %v324
    %vm328 = vcmp.eq.s32.totalorder %v307, %v324
    %vm329 = vcmp.eq.s32.totalorder %v308, %v324
    %vm330 = vcmp.eq.s32.totalorder %v309, %v324
    %vm331 = vcmp.eq.s32.totalorder %v310, %v324
    %vm332 = vcmp.eq.s32.totalorder %v311, %v324
    %vm333 = vcmp.eq.s32.totalorder %v312, %v324
    %vm334 = vcmp.eq.s32.totalorder %v313, %v324
    %vm335 = vcmp.eq.s32.totalorder %v314, %v324
    %vm336 = vcmp.eq.s32.totalorder %v315, %v324
    %vm337 = vcmp.eq.s32.totalorder %v316, %v324
    %vm338 = vcmp.eq.s32.totalorder %v317, %v324
    %vm339 = vcmp.eq.s32.totalorder %v318, %v324
    %vm340 = vcmp.eq.s32.totalorder %v319, %v324
    %v341 = vld [vmem:[%s2] sm:$0xff]
    %v342 = vld [vmem:[%s2 + $0x8] sm:$0xff]
    %v343 = vld [vmem:[%s2 + $0x10] sm:$0xff]
    %v344 = vld [vmem:[%s2 + $0x18] sm:$0xff]
    %v345 = vld [vmem:[%s2 + $0x20] sm:$0xff]
    %v346 = vld [vmem:[%s2 + $0x28] sm:$0xff]
    %v347 = vld [vmem:[%s2 + $0x30] sm:$0xff]
    %v348 = vld [vmem:[%s2 + $0x38] sm:$0xff]
    %v349 = vld [vmem:[%s2 + $0x40] sm:$0xff]
    %v350 = vld [vmem:[%s2 + $0x48] sm:$0xff]
    %v351 = vld [vmem:[%s2 + $0x50] sm:$0xff]
    %v352 = vld [vmem:[%s2 + $0x58] sm:$0xff]
    %v353 = vld [vmem:[%s2 + $0x60] sm:$0xff]
    %v354 = vld [vmem:[%s2 + $0x68] sm:$0xff]
    %v355 = vld [vmem:[%s2 + $0x70] sm:$0xff]
    %v356 = vld [vmem:[%s2 + $0x78] sm:$0xff]
    %v357 = vld [vmem:[%s3] sm:$0x1]
    %358 = vset.pattern.permute.xlu0 0
    %359 = vperm.xlu0 %358, %v341
    %v360 = vpop.permute.xlu0 %359
    %361 = vset.pattern.permute.xlu0 0
    %362 = vperm.xlu0 %361, %v342
    %v363 = vpop.permute.xlu0 %362
    %364 = vset.pattern.permute.xlu0 0
    %365 = vperm.xlu0 %364, %v343
    %v366 = vpop.permute.xlu0 %365
    %367 = vset.pattern.permute.xlu0 0
    %368 = vperm.xlu0 %367, %v344
    %v369 = vpop.permute.xlu0 %368
    %370 = vset.pattern.permute.xlu0 0
    %371 = vperm.xlu0 %370, %v345
    %v372 = vpop.permute.xlu0 %371
    %373 = vset.pattern.permute.xlu0 0
    %374 = vperm.xlu0 %373, %v346
    %v375 = vpop.permute.xlu0 %374
    %376 = vset.pattern.permute.xlu0 0
    %377 = vperm.xlu0 %376, %v347
    %v378 = vpop.permute.xlu0 %377
    %379 = vset.pattern.permute.xlu0 0
    %380 = vperm.xlu0 %379, %v348
    %v381 = vpop.permute.xlu0 %380
    %382 = vset.pattern.permute.xlu0 0
    %383 = vperm.xlu0 %382, %v349
    %v384 = vpop.permute.xlu0 %383
    %385 = vset.pattern.permute.xlu0 0
    %386 = vperm.xlu0 %385, %v350
    %v387 = vpop.permute.xlu0 %386
    %388 = vset.pattern.permute.xlu0 0
    %389 = vperm.xlu0 %388, %v351
    %v390 = vpop.permute.xlu0 %389
    %391 = vset.pattern.permute.xlu0 0
    %392 = vperm.xlu0 %391, %v352
    %v393 = vpop.permute.xlu0 %392
    %394 = vset.pattern.permute.xlu0 0
    %395 = vperm.xlu0 %394, %v353
    %v396 = vpop.permute.xlu0 %395
    %397 = vset.pattern.permute.xlu0 0
    %398 = vperm.xlu0 %397, %v354
    %v399 = vpop.permute.xlu0 %398
    %400 = vset.pattern.permute.xlu0 0
    %401 = vperm.xlu0 %400, %v355
    %v402 = vpop.permute.xlu0 %401
    %403 = vset.pattern.permute.xlu0 0
    %404 = vperm.xlu0 %403, %v356
    %v405 = vpop.permute.xlu0 %404
    %v406 = vlaneseq
    %v407 = vshrl.u32 %v406, 7
    %v408 = vsub.s32 0, %v407
    %v409 = vrot.slane %v357, %v408
    %vm410 = vcmp.eq.s32.totalorder %v360, %v409
    %vm411 = vcmp.eq.s32.totalorder %v363, %v409
    %vm412 = vcmp.eq.s32.totalorder %v366, %v409
    %vm413 = vcmp.eq.s32.totalorder %v369, %v409
    %vm414 = vcmp.eq.s32.totalorder %v372, %v409
    %vm415 = vcmp.eq.s32.totalorder %v375, %v409
    %vm416 = vcmp.eq.s32.totalorder %v378, %v409
    %vm417 = vcmp.eq.s32.totalorder %v381, %v409
    %vm418 = vcmp.eq.s32.totalorder %v384, %v409
    %vm419 = vcmp.eq.s32.totalorder %v387, %v409
    %vm420 = vcmp.eq.s32.totalorder %v390, %v409
    %vm421 = vcmp.eq.s32.totalorder %v393, %v409
    %vm422 = vcmp.eq.s32.totalorder %v396, %v409
    %vm423 = vcmp.eq.s32.totalorder %v399, %v409
    %vm424 = vcmp.eq.s32.totalorder %v402, %v409
    %vm425 = vcmp.eq.s32.totalorder %v405, %v409
    %vm426 = vcmp.lt.s32.totalorder %v324, 8
    %vm427 = vcmp.lt.s32.totalorder %v304, 8
    %vm428 = vcmp.lt.s32.totalorder %v305, 8
    %vm429 = vcmp.lt.s32.totalorder %v306, 8
    %vm430 = vcmp.lt.s32.totalorder %v307, 8
    %vm431 = vcmp.lt.s32.totalorder %v308, 8
    %vm432 = vcmp.lt.s32.totalorder %v309, 8
    %vm433 = vcmp.lt.s32.totalorder %v310, 8
    %vm434 = vcmp.lt.s32.totalorder %v311, 8
    %vm435 = vcmp.lt.s32.totalorder %v312, 8
    %vm436 = vcmp.lt.s32.totalorder %v313, 8
    %vm437 = vcmp.lt.s32.totalorder %v314, 8
    %vm438 = vcmp.lt.s32.totalorder %v315, 8
    %vm439 = vcmp.lt.s32.totalorder %v316, 8
    %vm440 = vcmp.lt.s32.totalorder %v317, 8
    %vm441 = vcmp.lt.s32.totalorder %v318, 8
    %vm442 = vcmp.lt.s32.totalorder %v319, 8
    %vm443 = vmxor %vm426, 1
    %vm444 = vmor %vm325, %vm443
    %vm445 = vmor %vm326, %vm443
    %vm446 = vmor %vm327, %vm443
    %vm447 = vmor %vm328, %vm443
    %vm448 = vmor %vm329, %vm443
    %vm449 = vmor %vm330, %vm443
    %vm450 = vmor %vm331, %vm443
    %vm451 = vmor %vm332, %vm443
    %vm452 = vmor %vm333, %vm443
    %vm453 = vmor %vm334, %vm443
    %vm454 = vmor %vm335, %vm443
    %vm455 = vmor %vm336, %vm443
    %vm456 = vmor %vm337, %vm443
    %vm457 = vmor %vm338, %vm443
    %vm458 = vmor %vm339, %vm443
    %vm459 = vmor %vm340, %vm443
    %vm460 = vmxor %vm325, 1
    %vm461 = vmxor %vm326, 1
    %vm462 = vmxor %vm327, 1
    %vm463 = vmxor %vm328, 1
    %vm464 = vmxor %vm329, 1
    %vm465 = vmxor %vm330, 1
    %vm466 = vmxor %vm331, 1
    %vm467 = vmxor %vm332, 1
    %vm468 = vmxor %vm333, 1
    %vm469 = vmxor %vm334, 1
    %vm470 = vmxor %vm335, 1
    %vm471 = vmxor %vm336, 1
    %vm472 = vmxor %vm337, 1
    %vm473 = vmxor %vm338, 1
    %vm474 = vmxor %vm339, 1
    %vm475 = vmxor %vm340, 1
    %vm476 = vmand %vm410, %vm460
    %vm477 = vmand %vm411, %vm461
    %vm478 = vmand %vm412, %vm462
    %vm479 = vmand %vm413, %vm463
    %vm480 = vmand %vm414, %vm464
    %vm481 = vmand %vm415, %vm465
    %vm482 = vmand %vm416, %vm466
    %vm483 = vmand %vm417, %vm467
    %vm484 = vmand %vm418, %vm468
    %vm485 = vmand %vm419, %vm469
    %vm486 = vmand %vm420, %vm470
    %vm487 = vmand %vm421, %vm471
    %vm488 = vmand %vm422, %vm472
    %vm489 = vmand %vm423, %vm473
    %vm490 = vmand %vm424, %vm474
    %vm491 = vmand %vm425, %vm475
    %vm492 = vmand %vm476, %vm426
    %vm493 = vmand %vm477, %vm426
    %vm494 = vmand %vm478, %vm426
    %vm495 = vmand %vm479, %vm426
    %vm496 = vmand %vm480, %vm426
    %vm497 = vmand %vm481, %vm426
    %vm498 = vmand %vm482, %vm426
    %vm499 = vmand %vm483, %vm426
    %vm500 = vmand %vm484, %vm426
    %vm501 = vmand %vm485, %vm426
    %vm502 = vmand %vm486, %vm426
    %vm503 = vmand %vm487, %vm426
    %vm504 = vmand %vm488, %vm426
    %vm505 = vmand %vm489, %vm426
    %vm506 = vmand %vm490, %vm426
    %vm507 = vmand %vm491, %vm426
    %vm508 = vmand %vm492, %vm427
    %vm509 = vmand %vm493, %vm428
    %vm510 = vmand %vm494, %vm429
    %vm511 = vmand %vm495, %vm430
    %vm512 = vmand %vm496, %vm431
    %vm513 = vmand %vm497, %vm432
    %vm514 = vmand %vm498, %vm433
    %vm515 = vmand %vm499, %vm434
    %vm516 = vmand %vm500, %vm435
    %vm517 = vmand %vm501, %vm436
    %vm518 = vmand %vm502, %vm437
    %vm519 = vmand %vm503, %vm438
    %vm520 = vmand %vm504, %vm439
    %vm521 = vmand %vm505, %vm440
    %vm522 = vmand %vm506, %vm441
    %vm523 = vmand %vm507, %vm442
    %v524 = vsel %vm444, -1e+09, %v207
    %v525 = vsel %vm445, -1e+09, %v212
    %v526 = vsel %vm446, -1e+09, %v217
    %v527 = vsel %vm447, -1e+09, %v222
    %v528 = vsel %vm448, -1e+09, %v227
    %v529 = vsel %vm449, -1e+09, %v232
    %v530 = vsel %vm450, -1e+09, %v237
    %v531 = vsel %vm451, -1e+09, %v242
    %v532 = vsel %vm452, -1e+09, %v247
    %v533 = vsel %vm453, -1e+09, %v252
    %v534 = vsel %vm454, -1e+09, %v257
    %v535 = vsel %vm455, -1e+09, %v262
    %v536 = vsel %vm456, -1e+09, %v267
    %v537 = vsel %vm457, -1e+09, %v272
    %v538 = vsel %vm458, -1e+09, %v277
    %v539 = vsel %vm459, -1e+09, %v282
    %v540 = vld [vmem:[#allocation2] sm:$0xff]
    %v541 = vld [vmem:[#allocation2 + $0x8] sm:$0xff]
    %v542 = vld [vmem:[#allocation2 + $0x10] sm:$0xff]
    %v543 = vld [vmem:[#allocation2 + $0x18] sm:$0xff]
    %v544 = vld [vmem:[#allocation2 + $0x20] sm:$0xff]
    %v545 = vld [vmem:[#allocation2 + $0x28] sm:$0xff]
    %v546 = vld [vmem:[#allocation2 + $0x30] sm:$0xff]
    %v547 = vld [vmem:[#allocation2 + $0x38] sm:$0xff]
    %v548 = vld [vmem:[#allocation2 + $0x40] sm:$0xff]
    %v549 = vld [vmem:[#allocation2 + $0x48] sm:$0xff]
    %v550 = vld [vmem:[#allocation2 + $0x50] sm:$0xff]
    %v551 = vld [vmem:[#allocation2 + $0x58] sm:$0xff]
    %v552 = vld [vmem:[#allocation2 + $0x60] sm:$0xff]
    %v553 = vld [vmem:[#allocation2 + $0x68] sm:$0xff]
    %v554 = vld [vmem:[#allocation2 + $0x70] sm:$0xff]
    %v555 = vld [vmem:[#allocation2 + $0x78] sm:$0xff]
    %v556 = vsub.f32 %v524, 10.0
    %v557 = vsub.f32 %v525, 10.0
    %v558 = vsub.f32 %v526, 10.0
    %v559 = vsub.f32 %v527, 10.0
    %v560 = vsub.f32 %v528, 10.0
    %v561 = vsub.f32 %v529, 10.0
    %v562 = vsub.f32 %v530, 10.0
    %v563 = vsub.f32 %v531, 10.0
    %v564 = vsub.f32 %v532, 10.0
    %v565 = vsub.f32 %v533, 10.0
    %v566 = vsub.f32 %v534, 10.0
    %v567 = vsub.f32 %v535, 10.0
    %v568 = vsub.f32 %v536, 10.0
    %v569 = vsub.f32 %v537, 10.0
    %v570 = vsub.f32 %v538, 10.0
    %v571 = vsub.f32 %v539, 10.0
    %v572 = vmul.f32 %v556, 1.442695
    %v573 = vpow.pop %v572
    %v574 = vmul.f32 %v557, 1.442695
    %v575 = vpow.pop %v574
    %v576 = vmul.f32 %v558, 1.442695
    %v577 = vpow.pop %v576
    %v578 = vmul.f32 %v559, 1.442695
    %v579 = vpow.pop %v578
    %v580 = vmul.f32 %v560, 1.442695
    %v581 = vpow.pop %v580
    %v582 = vmul.f32 %v561, 1.442695
    %v583 = vpow.pop %v582
    %v584 = vmul.f32 %v562, 1.442695
    %v585 = vpow.pop %v584
    %v586 = vmul.f32 %v563, 1.442695
    %v587 = vpow.pop %v586
    %v588 = vmul.f32 %v564, 1.442695
    %v589 = vpow.pop %v588
    %v590 = vmul.f32 %v565, 1.442695
    %v591 = vpow.pop %v590
    %v592 = vmul.f32 %v566, 1.442695
    %v593 = vpow.pop %v592
    %v594 = vmul.f32 %v567, 1.442695
    %v595 = vpow.pop %v594
    %v596 = vmul.f32 %v568, 1.442695
    %v597 = vpow.pop %v596
    %v598 = vmul.f32 %v569, 1.442695
    %v599 = vpow.pop %v598
    %v600 = vmul.f32 %v570, 1.442695
    %v601 = vpow.pop %v600
    %v602 = vmul.f32 %v571, 1.442695
    %v603 = vpow.pop %v602
    %604 = vadd.xlane.f32.xlu0 %v573
    %v605 = vpop.xlane.xlu0 %604
    %606 = vadd.xlane.f32.xlu0 %v575
    %v607 = vpop.xlane.xlu0 %606
    %608 = vadd.xlane.f32.xlu0 %v577
    %v609 = vpop.xlane.xlu0 %608
    %610 = vadd.xlane.f32.xlu0 %v579
    %v611 = vpop.xlane.xlu0 %610
    %612 = vadd.xlane.f32.xlu0 %v581
    %v613 = vpop.xlane.xlu0 %612
    %614 = vadd.xlane.f32.xlu0 %v583
    %v615 = vpop.xlane.xlu0 %614
    %616 = vadd.xlane.f32.xlu0 %v585
    %v617 = vpop.xlane.xlu0 %616
    %618 = vadd.xlane.f32.xlu0 %v587
    %v619 = vpop.xlane.xlu0 %618
    %620 = vadd.xlane.f32.xlu0 %v589
    %v621 = vpop.xlane.xlu0 %620
    %622 = vadd.xlane.f32.xlu0 %v591
    %v623 = vpop.xlane.xlu0 %622
    %624 = vadd.xlane.f32.xlu0 %v593
    %v625 = vpop.xlane.xlu0 %624
    %626 = vadd.xlane.f32.xlu0 %v595
    %v627 = vpop.xlane.xlu0 %626
    %628 = vadd.xlane.f32.xlu0 %v597
    %v629 = vpop.xlane.xlu0 %628
    %630 = vadd.xlane.f32.xlu0 %v599
    %v631 = vpop.xlane.xlu0 %630
    %632 = vadd.xlane.f32.xlu0 %v601
    %v633 = vpop.xlane.xlu0 %632
    %634 = vadd.xlane.f32.xlu0 %v603
    %v635 = vpop.xlane.xlu0 %634
    %v636 = vadd.f32 %v540, %v605
    %v637 = vadd.f32 %v541, %v607
    %v638 = vadd.f32 %v542, %v609
    %v639 = vadd.f32 %v543, %v611
    %v640 = vadd.f32 %v544, %v613
    %v641 = vadd.f32 %v545, %v615
    %v642 = vadd.f32 %v546, %v617
    %v643 = vadd.f32 %v547, %v619
    %v644 = vadd.f32 %v548, %v621
    %v645 = vadd.f32 %v549, %v623
    %v646 = vadd.f32 %v550, %v625
    %v647 = vadd.f32 %v551, %v627
    %v648 = vadd.f32 %v552, %v629
    %v649 = vadd.f32 %v553, %v631
    %v650 = vadd.f32 %v554, %v633
    %v651 = vadd.f32 %v555, %v635
    %vm652 = vcmask 7168
    %653 = vst.msk [vmem:[#allocation2] sm:$0xff] %vm652, %v636
    %654 = vst.msk [vmem:[#allocation2 + $0x8] sm:$0xff] %vm652, %v637
    %655 = vst.msk [vmem:[#allocation2 + $0x10] sm:$0xff] %vm652, %v638
    %656 = vst.msk [vmem:[#allocation2 + $0x18] sm:$0xff] %vm652, %v639
    %657 = vst.msk [vmem:[#allocation2 + $0x20] sm:$0xff] %vm652, %v640
    %658 = vst.msk [vmem:[#allocation2 + $0x28] sm:$0xff] %vm652, %v641
    %659 = vst.msk [vmem:[#allocation2 + $0x30] sm:$0xff] %vm652, %v642
    %660 = vst.msk [vmem:[#allocation2 + $0x38] sm:$0xff] %vm652, %v643
    %661 = vst.msk [vmem:[#allocation2 + $0x40] sm:$0xff] %vm652, %v644
    %662 = vst.msk [vmem:[#allocation2 + $0x48] sm:$0xff] %vm652, %v645
    %663 = vst.msk [vmem:[#allocation2 + $0x50] sm:$0xff] %vm652, %v646
    %664 = vst.msk [vmem:[#allocation2 + $0x58] sm:$0xff] %vm652, %v647
    %665 = vst.msk [vmem:[#allocation2 + $0x60] sm:$0xff] %vm652, %v648
    %666 = vst.msk [vmem:[#allocation2 + $0x68] sm:$0xff] %vm652, %v649
    %667 = vst.msk [vmem:[#allocation2 + $0x70] sm:$0xff] %vm652, %v650
    %668 = vst.msk [vmem:[#allocation2 + $0x78] sm:$0xff] %vm652, %v651
    %v669 = vld [vmem:[#allocation3] sm:$0xff]
    %v670 = vld [vmem:[#allocation3 + $0x8] sm:$0xff]
    %v671 = vld [vmem:[#allocation3 + $0x10] sm:$0xff]
    %v672 = vld [vmem:[#allocation3 + $0x18] sm:$0xff]
    %v673 = vld [vmem:[#allocation3 + $0x20] sm:$0xff]
    %v674 = vld [vmem:[#allocation3 + $0x28] sm:$0xff]
    %v675 = vld [vmem:[#allocation3 + $0x30] sm:$0xff]
    %v676 = vld [vmem:[#allocation3 + $0x38] sm:$0xff]
    %v677 = vld [vmem:[#allocation3 + $0x40] sm:$0xff]
    %v678 = vld [vmem:[#allocation3 + $0x48] sm:$0xff]
    %v679 = vld [vmem:[#allocation3 + $0x50] sm:$0xff]
    %v680 = vld [vmem:[#allocation3 + $0x58] sm:$0xff]
    %v681 = vld [vmem:[#allocation3 + $0x60] sm:$0xff]
    %v682 = vld [vmem:[#allocation3 + $0x68] sm:$0xff]
    %v683 = vld [vmem:[#allocation3 + $0x70] sm:$0xff]
    %v684 = vld [vmem:[#allocation3 + $0x78] sm:$0xff]
    %v685 = vsel %vm508, %v524, 0.0
    %v686 = vsel %vm509, %v525, 0.0
    %v687 = vsel %vm510, %v526, 0.0
    %v688 = vsel %vm511, %v527, 0.0
    %v689 = vsel %vm512, %v528, 0.0
    %v690 = vsel %vm513, %v529, 0.0
    %v691 = vsel %vm514, %v530, 0.0
    %v692 = vsel %vm515, %v531, 0.0
    %v693 = vsel %vm516, %v532, 0.0
    %v694 = vsel %vm517, %v533, 0.0
    %v695 = vsel %vm518, %v534, 0.0
    %v696 = vsel %vm519, %v535, 0.0
    %v697 = vsel %vm520, %v536, 0.0
    %v698 = vsel %vm521, %v537, 0.0
    %v699 = vsel %vm522, %v538, 0.0
    %v700 = vsel %vm523, %v539, 0.0
    %701 = vadd.xlane.f32.xlu0 %v685
    %v702 = vpop.xlane.xlu0 %701
    %703 = vadd.xlane.f32.xlu0 %v686
    %v704 = vpop.xlane.xlu0 %703
    %705 = vadd.xlane.f32.xlu0 %v687
    %v706 = vpop.xlane.xlu0 %705
    %707 = vadd.xlane.f32.xlu0 %v688
    %v708 = vpop.xlane.xlu0 %707
    %709 = vadd.xlane.f32.xlu0 %v689
    %v710 = vpop.xlane.xlu0 %709
    %711 = vadd.xlane.f32.xlu0 %v690
    %v712 = vpop.xlane.xlu0 %711
    %713 = vadd.xlane.f32.xlu0 %v691
    %v714 = vpop.xlane.xlu0 %713
    %715 = vadd.xlane.f32.xlu0 %v692
    %v716 = vpop.xlane.xlu0 %715
    %717 = vadd.xlane.f32.xlu0 %v693
    %v718 = vpop.xlane.xlu0 %717
    %719 = vadd.xlane.f32.xlu0 %v694
    %v720 = vpop.xlane.xlu0 %719
    %721 = vadd.xlane.f32.xlu0 %v695
    %v722 = vpop.xlane.xlu0 %721
    %723 = vadd.xlane.f32.xlu0 %v696
    %v724 = vpop.xlane.xlu0 %723
    %725 = vadd.xlane.f32.xlu0 %v697
    %v726 = vpop.xlane.xlu0 %725
    %727 = vadd.xlane.f32.xlu0 %v698
    %v728 = vpop.xlane.xlu0 %727
    %729 = vadd.xlane.f32.xlu0 %v699
    %v730 = vpop.xlane.xlu0 %729
    %731 = vadd.xlane.f32.xlu0 %v700
    %v732 = vpop.xlane.xlu0 %731
    %v733 = vadd.f32 %v669, %v702
    %v734 = vadd.f32 %v670, %v704
    %v735 = vadd.f32 %v671, %v706
    %v736 = vadd.f32 %v672, %v708
    %v737 = vadd.f32 %v673, %v710
    %v738 = vadd.f32 %v674, %v712
    %v739 = vadd.f32 %v675, %v714
    %v740 = vadd.f32 %v676, %v716
    %v741 = vadd.f32 %v677, %v718
    %v742 = vadd.f32 %v678, %v720
    %v743 = vadd.f32 %v679, %v722
    %v744 = vadd.f32 %v680, %v724
    %v745 = vadd.f32 %v681, %v726
    %v746 = vadd.f32 %v682, %v728
    %v747 = vadd.f32 %v683, %v730
    %v748 = vadd.f32 %v684, %v732
    %749 = vst.msk [vmem:[#allocation3] sm:$0xff] %vm652, %v733
    %750 = vst.msk [vmem:[#allocation3 + $0x8] sm:$0xff] %vm652, %v734
    %751 = vst.msk [vmem:[#allocation3 + $0x10] sm:$0xff] %vm652, %v735
    %752 = vst.msk [vmem:[#allocation3 + $0x18] sm:$0xff] %vm652, %v736
    %753 = vst.msk [vmem:[#allocation3 + $0x20] sm:$0xff] %vm652, %v737
    %754 = vst.msk [vmem:[#allocation3 + $0x28] sm:$0xff] %vm652, %v738
    %755 = vst.msk [vmem:[#allocation3 + $0x30] sm:$0xff] %vm652, %v739
    %756 = vst.msk [vmem:[#allocation3 + $0x38] sm:$0xff] %vm652, %v740
    %757 = vst.msk [vmem:[#allocation3 + $0x40] sm:$0xff] %vm652, %v741
    %758 = vst.msk [vmem:[#allocation3 + $0x48] sm:$0xff] %vm652, %v742
    %759 = vst.msk [vmem:[#allocation3 + $0x50] sm:$0xff] %vm652, %v743
    %760 = vst.msk [vmem:[#allocation3 + $0x58] sm:$0xff] %vm652, %v744
    %761 = vst.msk [vmem:[#allocation3 + $0x60] sm:$0xff] %vm652, %v745
    %762 = vst.msk [vmem:[#allocation3 + $0x68] sm:$0xff] %vm652, %v746
    %763 = vst.msk [vmem:[#allocation3 + $0x70] sm:$0xff] %vm652, %v747
    %764 = vst.msk [vmem:[#allocation3 + $0x78] sm:$0xff] %vm652, %v748
    %v765 = vld [vmem:[#allocation4] sm:$0xff]
    %v766 = vld [vmem:[#allocation4 + $0x8] sm:$0xff]
    %v767 = vld [vmem:[#allocation4 + $0x10] sm:$0xff]
    %v768 = vld [vmem:[#allocation4 + $0x18] sm:$0xff]
    %v769 = vld [vmem:[#allocation4 + $0x20] sm:$0xff]
    %v770 = vld [vmem:[#allocation4 + $0x28] sm:$0xff]
    %v771 = vld [vmem:[#allocation4 + $0x30] sm:$0xff]
    %v772 = vld [vmem:[#allocation4 + $0x38] sm:$0xff]
    %v773 = vld [vmem:[#allocation4 + $0x40] sm:$0xff]
    %v774 = vld [vmem:[#allocation4 + $0x48] sm:$0xff]
    %v775 = vld [vmem:[#allocation4 + $0x50] sm:$0xff]
    %v776 = vld [vmem:[#allocation4 + $0x58] sm:$0xff]
    %v777 = vld [vmem:[#allocation4 + $0x60] sm:$0xff]
    %v778 = vld [vmem:[#allocation4 + $0x68] sm:$0xff]
    %v779 = vld [vmem:[#allocation4 + $0x70] sm:$0xff]
    %v780 = vld [vmem:[#allocation4 + $0x78] sm:$0xff]
    %v781 = vsel %vm508, 1, 0
    %v782 = vsel %vm509, 1, 0
    %v783 = vsel %vm510, 1, 0
    %v784 = vsel %vm511, 1, 0
    %v785 = vsel %vm512, 1, 0
    %v786 = vsel %vm513, 1, 0
    %v787 = vsel %vm514, 1, 0
    %v788 = vsel %vm515, 1, 0
    %v789 = vsel %vm516, 1, 0
    %v790 = vsel %vm517, 1, 0
    %v791 = vsel %vm518, 1, 0
    %v792 = vsel %vm519, 1, 0
    %v793 = vsel %vm520, 1, 0
    %v794 = vsel %vm521, 1, 0
    %v795 = vsel %vm522, 1, 0
    %v796 = vsel %vm523, 1, 0
    %v797 = vcvt.s32.f32 %v781
    %v798 = vcvt.s32.f32 %v782
    %v799 = vcvt.s32.f32 %v783
    %v800 = vcvt.s32.f32 %v784
    %v801 = vcvt.s32.f32 %v785
    %v802 = vcvt.s32.f32 %v786
    %v803 = vcvt.s32.f32 %v787
    %v804 = vcvt.s32.f32 %v788
    %v805 = vcvt.s32.f32 %v789
    %v806 = vcvt.s32.f32 %v790
    %v807 = vcvt.s32.f32 %v791
    %v808 = vcvt.s32.f32 %v792
    %v809 = vcvt.s32.f32 %v793
    %v810 = vcvt.s32.f32 %v794
    %v811 = vcvt.s32.f32 %v795
    %v812 = vcvt.s32.f32 %v796
    %813 = vadd.xlane.f32.xlu0 %v797
    %v814 = vpop.xlane.xlu0 %813
    %815 = vadd.xlane.f32.xlu0 %v798
    %v816 = vpop.xlane.xlu0 %815
    %817 = vadd.xlane.f32.xlu0 %v799
    %v818 = vpop.xlane.xlu0 %817
    %819 = vadd.xlane.f32.xlu0 %v800
    %v820 = vpop.xlane.xlu0 %819
    %821 = vadd.xlane.f32.xlu0 %v801
    %v822 = vpop.xlane.xlu0 %821
    %823 = vadd.xlane.f32.xlu0 %v802
    %v824 = vpop.xlane.xlu0 %823
    %825 = vadd.xlane.f32.xlu0 %v803
    %v826 = vpop.xlane.xlu0 %825
    %827 = vadd.xlane.f32.xlu0 %v804
    %v828 = vpop.xlane.xlu0 %827
    %829 = vadd.xlane.f32.xlu0 %v805
    %v830 = vpop.xlane.xlu0 %829
    %831 = vadd.xlane.f32.xlu0 %v806
    %v832 = vpop.xlane.xlu0 %831
    %833 = vadd.xlane.f32.xlu0 %v807
    %v834 = vpop.xlane.xlu0 %833
    %835 = vadd.xlane.f32.xlu0 %v808
    %v836 = vpop.xlane.xlu0 %835
    %837 = vadd.xlane.f32.xlu0 %v809
    %v838 = vpop.xlane.xlu0 %837
    %839 = vadd.xlane.f32.xlu0 %v810
    %v840 = vpop.xlane.xlu0 %839
    %841 = vadd.xlane.f32.xlu0 %v811
    %v842 = vpop.xlane.xlu0 %841
    %843 = vadd.xlane.f32.xlu0 %v812
    %v844 = vpop.xlane.xlu0 %843
    %v845 = vadd.f32 %v765, %v814
    %v846 = vadd.f32 %v766, %v816
    %v847 = vadd.f32 %v767, %v818
    %v848 = vadd.f32 %v768, %v820
    %v849 = vadd.f32 %v769, %v822
    %v850 = vadd.f32 %v770, %v824
    %v851 = vadd.f32 %v771, %v826
    %v852 = vadd.f32 %v772, %v828
    %v853 = vadd.f32 %v773, %v830
    %v854 = vadd.f32 %v774, %v832
    %v855 = vadd.f32 %v775, %v834
    %v856 = vadd.f32 %v776, %v836
    %v857 = vadd.f32 %v777, %v838
    %v858 = vadd.f32 %v778, %v840
    %v859 = vadd.f32 %v779, %v842
    %v860 = vadd.f32 %v780, %v844
    %861 = vst.msk [vmem:[#allocation4] sm:$0xff] %vm652, %v845
    %862 = vst.msk [vmem:[#allocation4 + $0x8] sm:$0xff] %vm652, %v846
    %863 = vst.msk [vmem:[#allocation4 + $0x10] sm:$0xff] %vm652, %v847
    %864 = vst.msk [vmem:[#allocation4 + $0x18] sm:$0xff] %vm652, %v848
    %865 = vst.msk [vmem:[#allocation4 + $0x20] sm:$0xff] %vm652, %v849
    %866 = vst.msk [vmem:[#allocation4 + $0x28] sm:$0xff] %vm652, %v850
    %867 = vst.msk [vmem:[#allocation4 + $0x30] sm:$0xff] %vm652, %v851
    %868 = vst.msk [vmem:[#allocation4 + $0x38] sm:$0xff] %vm652, %v852
    %869 = vst.msk [vmem:[#allocation4 + $0x40] sm:$0xff] %vm652, %v853
    %870 = vst.msk [vmem:[#allocation4 + $0x48] sm:$0xff] %vm652, %v854
    %871 = vst.msk [vmem:[#allocation4 + $0x50] sm:$0xff] %vm652, %v855
    %872 = vst.msk [vmem:[#allocation4 + $0x58] sm:$0xff] %vm652, %v856
    %873 = vst.msk [vmem:[#allocation4 + $0x60] sm:$0xff] %vm652, %v857
    %874 = vst.msk [vmem:[#allocation4 + $0x68] sm:$0xff] %vm652, %v858
    %875 = vst.msk [vmem:[#allocation4 + $0x70] sm:$0xff] %vm652, %v859
    %876 = vst.msk [vmem:[#allocation4 + $0x78] sm:$0xff] %vm652, %v860
    // Predicated region
    $region22: #{tpu_custom_call.1} parent=1 // pred_check
      %p877 = pneg %p18
    $region23: #{tpu_custom_call.1} parent=1 // pred_check_branch
      %879 = sbr.rel (%p877) target = $region25
    $region24: #{tpu_custom_call.1} parent=1 // pred_region
      %v880 = vld [vmem:[#allocation2] sm:$0xff]
      %v881 = vld [vmem:[#allocation2 + $0x8] sm:$0xff]
      %v882 = vld [vmem:[#allocation2 + $0x10] sm:$0xff]
      %v883 = vld [vmem:[#allocation2 + $0x18] sm:$0xff]
      %v884 = vld [vmem:[#allocation2 + $0x20] sm:$0xff]
      %v885 = vld [vmem:[#allocation2 + $0x28] sm:$0xff]
      %v886 = vld [vmem:[#allocation2 + $0x30] sm:$0xff]
      %v887 = vld [vmem:[#allocation2 + $0x38] sm:$0xff]
      %v888 = vld [vmem:[#allocation2 + $0x40] sm:$0xff]
      %v889 = vld [vmem:[#allocation2 + $0x48] sm:$0xff]
      %v890 = vld [vmem:[#allocation2 + $0x50] sm:$0xff]
      %v891 = vld [vmem:[#allocation2 + $0x58] sm:$0xff]
      %v892 = vld [vmem:[#allocation2 + $0x60] sm:$0xff]
      %v893 = vld [vmem:[#allocation2 + $0x68] sm:$0xff]
      %v894 = vld [vmem:[#allocation2 + $0x70] sm:$0xff]
      %v895 = vld [vmem:[#allocation2 + $0x78] sm:$0xff]
      %v896 = vlog2.pop %v880
      %v897 = vmul.f32 %v896, 0.6931472
      %v898 = vlog2.pop %v881
      %v899 = vmul.f32 %v898, 0.6931472
      %v900 = vlog2.pop %v882
      %v901 = vmul.f32 %v900, 0.6931472
      %v902 = vlog2.pop %v883
      %v903 = vmul.f32 %v902, 0.6931472
      %v904 = vlog2.pop %v884
      %v905 = vmul.f32 %v904, 0.6931472
      %v906 = vlog2.pop %v885
      %v907 = vmul.f32 %v906, 0.6931472
      %v908 = vlog2.pop %v886
      %v909 = vmul.f32 %v908, 0.6931472
      %v910 = vlog2.pop %v887
      %v911 = vmul.f32 %v910, 0.6931472
      %v912 = vlog2.pop %v888
      %v913 = vmul.f32 %v912, 0.6931472
      %v914 = vlog2.pop %v889
      %v915 = vmul.f32 %v914, 0.6931472
      %v916 = vlog2.pop %v890
      %v917 = vmul.f32 %v916, 0.6931472
      %v918 = vlog2.pop %v891
      %v919 = vmul.f32 %v918, 0.6931472
      %v920 = vlog2.pop %v892
      %v921 = vmul.f32 %v920, 0.6931472
      %v922 = vlog2.pop %v893
      %v923 = vmul.f32 %v922, 0.6931472
      %v924 = vlog2.pop %v894
      %v925 = vmul.f32 %v924, 0.6931472
      %v926 = vlog2.pop %v895
      %v927 = vmul.f32 %v926, 0.6931472
      %v928 = vadd.f32 %v897, 10.0
      %v929 = vadd.f32 %v899, 10.0
      %v930 = vadd.f32 %v901, 10.0
      %v931 = vadd.f32 %v903, 10.0
      %v932 = vadd.f32 %v905, 10.0
      %v933 = vadd.f32 %v907, 10.0
      %v934 = vadd.f32 %v909, 10.0
      %v935 = vadd.f32 %v911, 10.0
      %v936 = vadd.f32 %v913, 10.0
      %v937 = vadd.f32 %v915, 10.0
      %v938 = vadd.f32 %v917, 10.0
      %v939 = vadd.f32 %v919, 10.0
      %v940 = vadd.f32 %v921, 10.0
      %v941 = vadd.f32 %v923, 10.0
      %v942 = vadd.f32 %v925, 10.0
      %v943 = vadd.f32 %v927, 10.0
      %v944 = vld [vmem:[#allocation4] sm:$0xff]
      %v945 = vld [vmem:[#allocation4 + $0x8] sm:$0xff]
      %v946 = vld [vmem:[#allocation4 + $0x10] sm:$0xff]
      %v947 = vld [vmem:[#allocation4 + $0x18] sm:$0xff]
      %v948 = vld [vmem:[#allocation4 + $0x20] sm:$0xff]
      %v949 = vld [vmem:[#allocation4 + $0x28] sm:$0xff]
      %v950 = vld [vmem:[#allocation4 + $0x30] sm:$0xff]
      %v951 = vld [vmem:[#allocation4 + $0x38] sm:$0xff]
      %v952 = vld [vmem:[#allocation4 + $0x40] sm:$0xff]
      %v953 = vld [vmem:[#allocation4 + $0x48] sm:$0xff]
      %v954 = vld [vmem:[#allocation4 + $0x50] sm:$0xff]
      %v955 = vld [vmem:[#allocation4 + $0x58] sm:$0xff]
      %v956 = vld [vmem:[#allocation4 + $0x60] sm:$0xff]
      %v957 = vld [vmem:[#allocation4 + $0x68] sm:$0xff]
      %v958 = vld [vmem:[#allocation4 + $0x70] sm:$0xff]
      %v959 = vld [vmem:[#allocation4 + $0x78] sm:$0xff]
      %vm960 = vcmp.gt.f32.partialorder %v944, 0.0
      %vm961 = vcmp.gt.f32.partialorder %v945, 0.0
      %vm962 = vcmp.gt.f32.partialorder %v946, 0.0
      %vm963 = vcmp.gt.f32.partialorder %v947, 0.0
      %vm964 = vcmp.gt.f32.partialorder %v948, 0.0
      %vm965 = vcmp.gt.f32.partialorder %v949, 0.0
      %vm966 = vcmp.gt.f32.partialorder %v950, 0.0
      %vm967 = vcmp.gt.f32.partialorder %v951, 0.0
      %vm968 = vcmp.gt.f32.partialorder %v952, 0.0
      %vm969 = vcmp.gt.f32.partialorder %v953, 0.0
      %vm970 = vcmp.gt.f32.partialorder %v954, 0.0
      %vm971 = vcmp.gt.f32.partialorder %v955, 0.0
      %vm972 = vcmp.gt.f32.partialorder %v956, 0.0
      %vm973 = vcmp.gt.f32.partialorder %v957, 0.0
      %vm974 = vcmp.gt.f32.partialorder %v958, 0.0
      %vm975 = vcmp.gt.f32.partialorder %v959, 0.0
      %v976 = vld [vmem:[#allocation3] sm:$0xff]
      %v977 = vld [vmem:[#allocation3 + $0x8] sm:$0xff]
      %v978 = vld [vmem:[#allocation3 + $0x10] sm:$0xff]
      %v979 = vld [vmem:[#allocation3 + $0x18] sm:$0xff]
      %v980 = vld [vmem:[#allocation3 + $0x20] sm:$0xff]
      %v981 = vld [vmem:[#allocation3 + $0x28] sm:$0xff]
      %v982 = vld [vmem:[#allocation3 + $0x30] sm:$0xff]
      %v983 = vld [vmem:[#allocation3 + $0x38] sm:$0xff]
      %v984 = vld [vmem:[#allocation3 + $0x40] sm:$0xff]
      %v985 = vld [vmem:[#allocation3 + $0x48] sm:$0xff]
      %v986 = vld [vmem:[#allocation3 + $0x50] sm:$0xff]
      %v987 = vld [vmem:[#allocation3 + $0x58] sm:$0xff]
      %v988 = vld [vmem:[#allocation3 + $0x60] sm:$0xff]
      %v989 = vld [vmem:[#allocation3 + $0x68] sm:$0xff]
      %v990 = vld [vmem:[#allocation3 + $0x70] sm:$0xff]
      %v991 = vld [vmem:[#allocation3 + $0x78] sm:$0xff]
      %v992 = vmul.f32 %v944, %v928
      %v993 = vmul.f32 %v945, %v929
      %v994 = vmul.f32 %v946, %v930
      %v995 = vmul.f32 %v947, %v931
      %v996 = vmul.f32 %v948, %v932
      %v997 = vmul.f32 %v949, %v933
      %v998 = vmul.f32 %v950, %v934
      %v999 = vmul.f32 %v951, %v935
      %v1000 = vmul.f32 %v952, %v936
      %v1001 = vmul.f32 %v953, %v937
      %v1002 = vmul.f32 %v954, %v938
      %v1003 = vmul.f32 %v955, %v939
      %v1004 = vmul.f32 %v956, %v940
      %v1005 = vmul.f32 %v957, %v941
      %v1006 = vmul.f32 %v958, %v942
      %v1007 = vmul.f32 %v959, %v943
      %v1008 = vsub.f32 %v976, %v992
      %v1009 = vsub.f32 %v977, %v993
      %v1010 = vsub.f32 %v978, %v994
      %v1011 = vsub.f32 %v979, %v995
      %v1012 = vsub.f32 %v980, %v996
      %v1013 = vsub.f32 %v981, %v997
      %v1014 = vsub.f32 %v982, %v998
      %v1015 = vsub.f32 %v983, %v999
      %v1016 = vsub.f32 %v984, %v1000
      %v1017 = vsub.f32 %v985, %v1001
      %v1018 = vsub.f32 %v986, %v1002
      %v1019 = vsub.f32 %v987, %v1003
      %v1020 = vsub.f32 %v988, %v1004
      %v1021 = vsub.f32 %v989, %v1005
      %v1022 = vsub.f32 %v990, %v1006
      %v1023 = vsub.f32 %v991, %v1007
      %v1024 = vmax.f32 %v944, 1.0
      %v1025 = vmax.f32 %v945, 1.0
      %v1026 = vmax.f32 %v946, 1.0
      %v1027 = vmax.f32 %v947, 1.0
      %v1028 = vmax.f32 %v948, 1.0
      %v1029 = vmax.f32 %v949, 1.0
      %v1030 = vmax.f32 %v950, 1.0
      %v1031 = vmax.f32 %v951, 1.0
      %v1032 = vmax.f32 %v952, 1.0
      %v1033 = vmax.f32 %v953, 1.0
      %v1034 = vmax.f32 %v954, 1.0
      %v1035 = vmax.f32 %v955, 1.0
      %v1036 = vmax.f32 %v956, 1.0
      %v1037 = vmax.f32 %v957, 1.0
      %v1038 = vmax.f32 %v958, 1.0
      %v1039 = vmax.f32 %v959, 1.0
      %v1040 = vrcp.pop %v1024
      %v1041 = vmul.f32 %v1008, %v1040
      %v1042 = vrcp.pop %v1025
      %v1043 = vmul.f32 %v1009, %v1042
      %v1044 = vrcp.pop %v1026
      %v1045 = vmul.f32 %v1010, %v1044
      %v1046 = vrcp.pop %v1027
      %v1047 = vmul.f32 %v1011, %v1046
      %v1048 = vrcp.pop %v1028
      %v1049 = vmul.f32 %v1012, %v1048
      %v1050 = vrcp.pop %v1029
      %v1051 = vmul.f32 %v1013, %v1050
      %v1052 = vrcp.pop %v1030
      %v1053 = vmul.f32 %v1014, %v1052
      %v1054 = vrcp.pop %v1031
      %v1055 = vmul.f32 %v1015, %v1054
      %v1056 = vrcp.pop %v1032
      %v1057 = vmul.f32 %v1016, %v1056
      %v1058 = vrcp.pop %v1033
      %v1059 = vmul.f32 %v1017, %v1058
      %v1060 = vrcp.pop %v1034
      %v1061 = vmul.f32 %v1018, %v1060
      %v1062 = vrcp.pop %v1035
      %v1063 = vmul.f32 %v1019, %v1062
      %v1064 = vrcp.pop %v1036
      %v1065 = vmul.f32 %v1020, %v1064
      %v1066 = vrcp.pop %v1037
      %v1067 = vmul.f32 %v1021, %v1066
      %v1068 = vrcp.pop %v1038
      %v1069 = vmul.f32 %v1022, %v1068
      %v1070 = vrcp.pop %v1039
      %v1071 = vmul.f32 %v1023, %v1070
      %v1072 = vsel %vm960, %v1041, 0.0
      %v1073 = vsel %vm961, %v1043, 0.0
      %v1074 = vsel %vm962, %v1045, 0.0
      %v1075 = vsel %vm963, %v1047, 0.0
      %v1076 = vsel %vm964, %v1049, 0.0
      %v1077 = vsel %vm965, %v1051, 0.0
      %v1078 = vsel %vm966, %v1053, 0.0
      %v1079 = vsel %vm967, %v1055, 0.0
      %v1080 = vsel %vm968, %v1057, 0.0
      %v1081 = vsel %vm969, %v1059, 0.0
      %v1082 = vsel %vm970, %v1061, 0.0
      %v1083 = vsel %vm971, %v1063, 0.0
      %v1084 = vsel %vm972, %v1065, 0.0
      %v1085 = vsel %vm973, %v1067, 0.0
      %v1086 = vsel %vm974, %v1069, 0.0
      %v1087 = vsel %vm975, %v1071, 0.0
      %v1088 = vsel %vm652, %v1072, 0.0
      %v1089 = vsel %vm652, %v1073, 0.0
      %v1090 = vadd.f32 %v1088, %v1089
      %v1091 = vsel %vm652, %v1074, 0.0
      %v1092 = vadd.f32 %v1090, %v1091
      %v1093 = vsel %vm652, %v1075, 0.0
      %v1094 = vadd.f32 %v1092, %v1093
      %v1095 = vsel %vm652, %v1076, 0.0
      %v1096 = vadd.f32 %v1094, %v1095
      %v1097 = vsel %vm652, %v1077, 0.0
      %v1098 = vadd.f32 %v1096, %v1097
      %v1099 = vsel %vm652, %v1078, 0.0
      %v1100 = vadd.f32 %v1098, %v1099
      %v1101 = vsel %vm652, %v1079, 0.0
      %v1102 = vadd.f32 %v1100, %v1101
      %v1103 = vsel %vm652, %v1080, 0.0
      %v1104 = vadd.f32 %v1102, %v1103
      %v1105 = vsel %vm652, %v1081, 0.0
      %v1106 = vadd.f32 %v1104, %v1105
      %v1107 = vsel %vm652, %v1082, 0.0
      %v1108 = vadd.f32 %v1106, %v1107
      %v1109 = vsel %vm652, %v1083, 0.0
      %v1110 = vadd.f32 %v1108, %v1109
      %v1111 = vsel %vm652, %v1084, 0.0
      %v1112 = vadd.f32 %v1110, %v1111
      %v1113 = vsel %vm652, %v1085, 0.0
      %v1114 = vadd.f32 %v1112, %v1113
      %v1115 = vsel %vm652, %v1086, 0.0
      %v1116 = vadd.f32 %v1114, %v1115
      %v1117 = vsel %vm652, %v1087, 0.0
      %v1118 = vadd.f32 %v1116, %v1117
      %1119 = vadd.xlane.f32.xlu0 %v1118
      %v1120 = vpop.xlane.xlu0 %1119
      %v1121 = vrot.slane %v1120, 4
      %v1122 = vadd.f32 %v1120, %v1121
      %v1123 = vrot.slane %v1122, 2
      %v1124 = vadd.f32 %v1122, %v1123
      %v1125 = vrot.slane %v1124, 1
      %v1126 = vadd.f32 %v1124, %v1125
      %s1127 = vtos %v1126
      %vm1128 = vcmp.eq.s32.totalorder %v287, 0
      %vm1129 = vcmp.eq.s32.totalorder %v322, 0
      %vm1130 = vmand %vm1128, %vm1129
      %v1131 = vstv %s1127
      %v1132 = vsel %vm1130, %v1131, 0.0
      %1133 = vst [vmem:[#allocation5] sm:$0xff] %v1132
    $region25: #{tpu_custom_call.1} parent=1 // pred_fallthru
      _
    // Predicated region
    $region26: #{tpu_custom_call.1} parent=1 // pred_check
      _
    $region27: #{tpu_custom_call.1} parent=1 // pred_check_branch
      %1135 = sbr.rel (0) target = $region29
    $region28: #{tpu_custom_call.1} parent=1 // pred_region
      %s1137 = ssub.s32 128, 128
      %1138 = vsyncadd [#allocation6], %s1137
      %s1140 = sshll.u32 [#allocation5], 4
      %s1141 = int_to_ptr.vmem [resolvable:$true] %s1140
      %1143 = dma.vmem_to_hbm [thread:$0]  %s1141, 128, %s4, [#allocation6]
    $region29: #{tpu_custom_call.1} parent=1 // pred_fallthru
      _
    // Predicated region
    $region30: #{tpu_custom_call.1} parent=1 // pred_check
      _
    $region31: #{tpu_custom_call.1} parent=1 // pred_check_branch
      %1145 = sbr.rel (0) target = $region33
    $region32: #{tpu_custom_call.1} parent=1 // pred_region
      %1146 = dma.done [#allocation6], 128
    $region33: #{tpu_custom_call.1} parent=1 // pred_fallthru
      _
    %1147 = vsyncpa [#allocation6], 1

</llo_original>
